<compile_context>
chip_gen: v6e
topology: v6e:2x2x1
jax: 0.10.0
libtpu: 0.0.40
codegen_flags: <defaults>
</compile_context>

<pallas_src>
import functools
import math

import jax
import jax.numpy as jnp
import numpy as np
from jax.experimental import pallas as pl
from jax.experimental.pallas import tpu as pltpu


# ----------------------------------------------------------------------------
# Helpers: tile-size selection.
# ----------------------------------------------------------------------------
def _pick_block_m(M, target=512):
    """Largest divisor of M that is <= target (stepping by 8), else M."""
    bm = min(M, target)
    while bm > 8 and M % bm != 0:
        bm -= 8
    if M % bm != 0:
        bm = M
    return bm


def _pick_tq(T, N, target_rows=128):
    """Smallest divisor Tq of T with N*Tq >= target_rows (else Tq = T)."""
    for tq in range(1, T + 1):
        if T % tq == 0 and N * tq >= target_rows:
            return tq
    return T


# ----------------------------------------------------------------------------
# Kernel 1: fused Q/K/V projections (three matmuls + bias in one call).
# query/key/value may be different tensors (cross attention), so the three
# GEMMs are kept separate but share one launch, one M-tiling and resident
# weights.
# ----------------------------------------------------------------------------
def _qkv_kernel(xq_ref, xk_ref, xv_ref, wq_ref, wk_ref, wv_ref,
                bq_ref, bk_ref, bv_ref, oq_ref, ok_ref, ov_ref):
    oq_ref[...] = (jnp.dot(xq_ref[...], wq_ref[...],
                           preferred_element_type=jnp.float32)
                   + bq_ref[...]).astype(oq_ref.dtype)
    ok_ref[...] = (jnp.dot(xk_ref[...], wk_ref[...],
                           preferred_element_type=jnp.float32)
                   + bk_ref[...]).astype(ok_ref.dtype)
    ov_ref[...] = (jnp.dot(xv_ref[...], wv_ref[...],
                           preferred_element_type=jnp.float32)
                   + bv_ref[...]).astype(ov_ref.dtype)


def qkv_projection(xq, xk, xv, wq, bq, wk, bk, wv, bv, block_m=512):
    M, H = xq.shape
    bm = _pick_block_m(M, block_m)
    row = lambda i: (i, 0)
    rep = lambda i: (0, 0)
    out_sd = jax.ShapeDtypeStruct((M, H), xq.dtype)
    return pl.pallas_call(
        _qkv_kernel,
        out_shape=(out_sd, out_sd, out_sd),
        grid=(M // bm,),
        in_specs=[
            pl.BlockSpec((bm, H), row), pl.BlockSpec((bm, H), row),
            pl.BlockSpec((bm, H), row),
            pl.BlockSpec((H, H), rep), pl.BlockSpec((H, H), rep),
            pl.BlockSpec((H, H), rep),
            pl.BlockSpec((1, H), rep), pl.BlockSpec((1, H), rep),
            pl.BlockSpec((1, H), rep),
        ],
        out_specs=(pl.BlockSpec((bm, H), row), pl.BlockSpec((bm, H), row),
                   pl.BlockSpec((bm, H), row)),
        compiler_params=pltpu.CompilerParams(
            dimension_semantics=("parallel",)),
    )(xq, xk, xv, wq, wk, wv,
      bq.reshape(1, H), bk.reshape(1, H), bv.reshape(1, H))


# ----------------------------------------------------------------------------
# Kernel 2: windowed multi-head attention.
#   grid = (B, T // Tq).  q/out are head-major blocks (1, nhead, Tq, N, D);
#   K/V are the full (time-padded) per-batch tensors, from which one
#   contiguous (Tq + 2w)-long window slab is sliced per step.  The band
#   (window) structure plus key padding is applied as a single -inf mask on
#   the (Tq*N, (Tq+2w)*N) score matrix, so out-of-window / out-of-range /
#   padded keys contribute exactly zero after softmax — numerically identical
#   to the reference's zero-padded windows.
# ----------------------------------------------------------------------------
def _wattn_kernel(q_ref, k_ref, v_ref, m_ref, o_ref, *, w, Tq, N, nhead, D):
    i = pl.program_id(1)
    klt = Tq + 2 * w          # window slab length (time steps)
    R = Tq * N                # query rows
    KL = klt * N              # key rows
    scale = 1.0 / math.sqrt(D)

    q = q_ref[0].astype(jnp.float32).reshape(nhead, R, D) * scale   # (h, R, D)

    t0 = i * Tq               # window start in the padded time axis
    kk = k_ref[0, :, pl.ds(t0, klt)].astype(jnp.float32).reshape(nhead, KL, D)
    vv = v_ref[0, :, pl.ds(t0, klt)].astype(jnp.float32).reshape(nhead, KL, D)
    mk = m_ref[0, pl.ds(i, 1)]                                      # (1, KL); 1.0 == masked

    # Band (window) mask + key-padding mask, shared across heads.
    row_t = jax.lax.broadcasted_iota(jnp.int32, (R, KL), 0) // N    # query time
    col_t = jax.lax.broadcasted_iota(jnp.int32, (R, KL), 1) // N    # key slab time
    dt = col_t - row_t
    out_of_band = jnp.logical_or(dt < 0, dt > 2 * w)
    masked = jnp.logical_or(out_of_band, mk > 0.5)                  # (R, KL)

    # Head-batched QK^T -> masked softmax -> PV.
    s = jnp.einsum("hqd,hkd->hqk", q, kk,
                   preferred_element_type=jnp.float32)              # (h, R, KL)
    s = jnp.where(masked[None, :, :], -jnp.inf, s)
    mmax = jnp.max(s, axis=-1, keepdims=True)
    mmax = jnp.maximum(mmax, -1e30)          # guard fully-masked rows (no NaN)
    p = jnp.exp(s - mmax)
    denom = jnp.maximum(jnp.sum(p, axis=-1, keepdims=True), 1e-30)
    p = p * pl.reciprocal(denom, approx=True)
    o = jnp.einsum("hqk,hkd->hqd", p, vv,
                   preferred_element_type=jnp.float32)              # (h, R, D)

    o_ref[0] = o.reshape(nhead, Tq, N, D).astype(o_ref.dtype)


def windowed_attention(q, k, v, key_padding_mask, w, nhead):
    B, T, N, H = q.shape
    D = H // nhead
    Tq = _pick_tq(T, N, target_rows=128)   # >=128 rows/step (256 also fine on v6e/v7x)
    nb = T // Tq
    klt = Tq + 2 * w
    KL = klt * N
    Tpad = T + 2 * w

    def to_heads(x):                                   # (B,T,N,H) -> (B,h,T,N,D)
        return x.reshape(B, T, N, nhead, D).transpose(0, 3, 1, 2, 4)

    qh = to_heads(q)
    kh = jnp.pad(to_heads(k), ((0, 0), (0, 0), (w, w), (0, 0), (0, 0)))
    vh = jnp.pad(to_heads(v), ((0, 0), (0, 0), (w, w), (0, 0), (0, 0)))

    # Padded key-padding mask (1.0 == masked), pre-flattened per time-block.
    kpm = key_padding_mask.astype(jnp.float32)
    kpm_pad = jnp.pad(kpm, ((0, 0), (w, w), (0, 0)), constant_values=1.0)
    idx = jnp.arange(nb)[:, None] * Tq + jnp.arange(klt)[None, :]   # (nb, klt)
    wm = kpm_pad[:, idx, :].reshape(B, nb, KL)                      # (B, nb, KL)

    kernel = functools.partial(_wattn_kernel, w=w, Tq=Tq, N=N, nhead=nhead, D=D)
    out = pl.pallas_call(
        kernel,
        out_shape=jax.ShapeDtypeStruct((B, nhead, T, N, D), q.dtype),
        grid=(B, nb),
        in_specs=[
            pl.BlockSpec((1, nhead, Tq, N, D), lambda b, i: (b, 0, i, 0, 0)),
            pl.BlockSpec((1, nhead, Tpad, N, D), lambda b, i: (b, 0, 0, 0, 0)),
            pl.BlockSpec((1, nhead, Tpad, N, D), lambda b, i: (b, 0, 0, 0, 0)),
            pl.BlockSpec((1, nb, KL), lambda b, i: (b, 0, 0)),
        ],
        out_specs=pl.BlockSpec((1, nhead, Tq, N, D), lambda b, i: (b, 0, i, 0, 0)),
        compiler_params=pltpu.CompilerParams(
            dimension_semantics=("parallel", "parallel"),
            vmem_limit_bytes=32 * 1024 * 1024),
    )(qh, kh, vh, wm)

    return out.transpose(0, 2, 3, 1, 4).reshape(B, T, N, H)


# ----------------------------------------------------------------------------
# Kernel 3: fused post-attention block, tiled over rows with resident weights:
#   x = LN1(query + attn_out); y = x + relu(x@W1+b1)@W2+b2; out = LN2(y)
# ----------------------------------------------------------------------------
def _post_kernel(x_ref, a_ref, w1_ref, b1_ref, w2_ref, b2_ref,
                 g1_ref, be1_ref, g2_ref, be2_ref, o_ref, *, eps):
    def ln(y, g, b):
        mu = jnp.mean(y, axis=-1, keepdims=True)
        d = y - mu
        var = jnp.mean(d * d, axis=-1, keepdims=True)
        return d * jax.lax.rsqrt(var + eps) * g + b

    x = ln(x_ref[...].astype(jnp.float32) + a_ref[...].astype(jnp.float32),
           g1_ref[...], be1_ref[...])
    h = jnp.dot(x, w1_ref[...], preferred_element_type=jnp.float32) + b1_ref[...]
    h = jnp.maximum(h, 0.0)
    y = x + jnp.dot(h, w2_ref[...], preferred_element_type=jnp.float32) + b2_ref[...]
    o_ref[...] = ln(y, g2_ref[...], be2_ref[...]).astype(o_ref.dtype)


def post_attention(x_res, attn_out, w1, b1, w2, b2, g1, be1, g2, be2,
                   eps=1e-5, block_m=512):
    M, H = x_res.shape
    F = w1.shape[1]
    bm = _pick_block_m(M, block_m)
    row = lambda i: (i, 0)
    rep = lambda i: (0, 0)
    return pl.pallas_call(
        functools.partial(_post_kernel, eps=eps),
        out_shape=jax.ShapeDtypeStruct((M, H), x_res.dtype),
        grid=(M // bm,),
        in_specs=[
            pl.BlockSpec((bm, H), row),
            pl.BlockSpec((bm, H), row),
            pl.BlockSpec((H, F), rep),
            pl.BlockSpec((1, F), rep),
            pl.BlockSpec((F, H), rep),
            pl.BlockSpec((1, H), rep),
            pl.BlockSpec((1, H), rep),
            pl.BlockSpec((1, H), rep),
            pl.BlockSpec((1, H), rep),
            pl.BlockSpec((1, H), rep),
        ],
        out_specs=pl.BlockSpec((bm, H), row),
        compiler_params=pltpu.CompilerParams(
            dimension_semantics=("parallel",)),
    )(x_res, attn_out, w1, b1.reshape(1, F), w2, b2.reshape(1, H),
      g1.reshape(1, H), be1.reshape(1, H), g2.reshape(1, H), be2.reshape(1, H))


# ----------------------------------------------------------------------------
# AttentionLayer forward (windowed path), composed from the three kernels.
# ----------------------------------------------------------------------------
def attention_layer_forward(params, query, key, value, key_padding_mask, *, w, nhead):
    B, T, N, H = query.shape
    M = B * T * N
    flat = lambda a: a.reshape(M, H)

    q, k, v = qkv_projection(flat(query), flat(key), flat(value),
                             params["wq"], params["bq"],
                             params["wk"], params["bk"],
                             params["wv"], params["bv"])
    q = q.reshape(B, T, N, H)
    k = k.reshape(B, T, N, H)
    v = v.reshape(B, T, N, H)

    attn_out = windowed_attention(q, k, v, key_padding_mask, w, nhead)  # (B,T,N,H)

    out = post_attention(flat(query), attn_out.reshape(M, H),
                         params["w1"], params["b1"], params["w2"], params["b2"],
                         params["g1"], params["be1"], params["g2"], params["be2"])
    return out.reshape(B, T, N, H)


# ----------------------------------------------------------------------------
# Pure-JAX reference (mirrors the PyTorch code, incl. zero-padded windows).
# ----------------------------------------------------------------------------
def reference_forward(params, query, key, value, kpm, *, w, nhead):
    HIGH = jax.lax.Precision.HIGHEST
    B, T, N, H = query.shape
    D = H // nhead
    W = 2 * w + 1

    def lin(x, wt, b):
        return jnp.dot(x, wt, precision=HIGH) + b

    q = lin(query, params["wq"], params["bq"]).reshape(B, T, N, nhead, D) / math.sqrt(D)
    k = lin(key, params["wk"], params["bk"]).reshape(B, T, N, nhead, D)
    v = lin(value, params["wv"], params["bv"]).reshape(B, T, N, nhead, D)

    wk = jnp.zeros((B, W, T, N, nhead, D), jnp.float32)
    wv = jnp.zeros((B, W, T, N, nhead, D), jnp.float32)
    wm = jnp.ones((B, W, T, N), bool)
    for i in range(W):
        s1 = max(w - i, 0); s2 = max(0, i - w); L = T - max(s1, s2)
        wk = wk.at[:, i, s1:s1 + L].set(k[:, s2:s2 + L])
        wv = wv.at[:, i, s1:s1 + L].set(v[:, s2:s2 + L])
        wm = wm.at[:, i, s1:s1 + L].set(kpm[:, s2:s2 + L])

    logit = jnp.einsum("btnhd,bwtmhd->btnwmh", q, wk, precision=HIGH)
    mask = jnp.transpose(wm, (0, 2, 1, 3))                    # B,T,W,N
    logit = jnp.where(mask[:, :, None, :, :, None], -jnp.inf, logit)
    attn = jax.nn.softmax(logit.reshape(B, T, N, W * N, nhead), axis=-2)
    wvv = jnp.transpose(wv, (0, 2, 1, 3, 4, 5)).reshape(B, T, W * N, nhead, D)
    attn_out = jnp.einsum("btnmh,btmhd->btnhd", attn, wvv,
                          precision=HIGH).reshape(B, T, N, H)

    def ln(x, g, b):
        mu = x.mean(-1, keepdims=True)
        var = ((x - mu) ** 2).mean(-1, keepdims=True)
        return (x - mu) / jnp.sqrt(var + 1e-5) * g + b

    x = ln(query + attn_out, params["g1"], params["be1"])
    h1 = jnp.maximum(lin(x, params["w1"], params["b1"]), 0.0)
    h2 = lin(h1, params["w2"], params["b2"])
    return ln(x + h2, params["g2"], params["be2"])


# ----------------------------------------------------------------------------
# Deterministic parameter init (matches nn.Linear fan-in uniform; LayerNorm
# uses torch defaults: weight=1, bias=0).
# ----------------------------------------------------------------------------
def init_params(key, q_dim, dim_ff):
    ks = jax.random.split(key, 10)

    def lin_init(kk, fan_in, fan_out):
        k1, k2 = jax.random.split(kk)
        bound = 1.0 / math.sqrt(fan_in)
        wt = jax.random.uniform(k1, (fan_in, fan_out), jnp.float32, -bound, bound)
        b = jax.random.uniform(k2, (fan_out,), jnp.float32, -bound, bound)
        return wt, b

    p = {}
    p["wq"], p["bq"] = lin_init(ks[0], q_dim, q_dim)
    p["wk"], p["bk"] = lin_init(ks[1], q_dim, q_dim)
    p["wv"], p["bv"] = lin_init(ks[2], q_dim, q_dim)
    p["w1"], p["b1"] = lin_init(ks[3], q_dim, dim_ff)
    p["w2"], p["b2"] = lin_init(ks[4], dim_ff, q_dim)
    p["g1"] = jnp.ones((q_dim,), jnp.float32)
    p["be1"] = jnp.zeros((q_dim,), jnp.float32)
    p["g2"] = jnp.ones((q_dim,), jnp.float32)
    p["be2"] = jnp.zeros((q_dim,), jnp.float32)
    return p


if __name__ == "__main__":
    B, T, N, H = 2, 8, 16, 32
    nhead, dim_ff, attn_window = 4, 64, 1

    root = jax.random.PRNGKey(0)
    k_p, k_q, k_k, k_v = jax.random.split(root, 4)
    params = init_params(k_p, H, dim_ff)

    query = jax.random.normal(k_q, (B, T, N, H), jnp.float32)
    key = jax.random.normal(k_k, (B, T, N, H), jnp.float32)
    value = jax.random.normal(k_v, (B, T, N, H), jnp.float32)

    # key_padding_mask: True = padded (masked).  Pad the last time step of
    # batch 0 only — every query still has at least one unmasked key.
    kpm = jnp.zeros((B, T, N), bool).at[0, T - 1, :].set(True)

    out = attention_layer_forward(params, query, key, value, kpm,
                                  w=attn_window, nhead=nhead)
    out = jax.block_until_ready(out)

    ref = reference_forward(params, query, key, value, kpm,
                            w=attn_window, nhead=nhead)
    # Slightly looser tolerance than pure-f32: softmax uses the EUP approximate
    # reciprocal (pl.reciprocal(..., approx=True)).
    np.testing.assert_allclose(np.asarray(out), np.asarray(ref),
                               rtol=2e-3, atol=2e-3)
    print("KERNEL_OK")
</pallas_src>

<mosaic_0001>
module attributes {stable_mosaic.version = 11 : i64} {
  func.func @_qkv_kernel(%arg0: i32, %arg1: memref<256x32xf32, #tpu.memory_space<vmem>>, %arg2: memref<256x32xf32, #tpu.memory_space<vmem>>, %arg3: memref<256x32xf32, #tpu.memory_space<vmem>>, %arg4: memref<32x32xf32, #tpu.memory_space<vmem>>, %arg5: memref<32x32xf32, #tpu.memory_space<vmem>>, %arg6: memref<32x32xf32, #tpu.memory_space<vmem>>, %arg7: memref<1x32xf32, #tpu.memory_space<vmem>>, %arg8: memref<1x32xf32, #tpu.memory_space<vmem>>, %arg9: memref<1x32xf32, #tpu.memory_space<vmem>>, %arg10: memref<256x32xf32, #tpu.memory_space<vmem>>, %arg11: memref<256x32xf32, #tpu.memory_space<vmem>>, %arg12: memref<256x32xf32, #tpu.memory_space<vmem>>) attributes {dimension_semantics = [#tpu.dimension_semantics<parallel>], iteration_bounds = array<i64: 1>, scalar_prefetch = 0 : i64, scratch_operands = 0 : i64, tpu.core_type = #tpu.core_type<tc>, window_params = [{transform_indices = @transform_0, window_bounds = array<i64: 256, 32>}, {transform_indices = @transform_1, window_bounds = array<i64: 256, 32>}, {transform_indices = @transform_2, window_bounds = array<i64: 256, 32>}, {pipeline_mode = #tpu.pipeline_mode<synchronous>, transform_indices = @transform_3, window_bounds = array<i64: 32, 32>}, {pipeline_mode = #tpu.pipeline_mode<synchronous>, transform_indices = @transform_4, window_bounds = array<i64: 32, 32>}, {pipeline_mode = #tpu.pipeline_mode<synchronous>, transform_indices = @transform_5, window_bounds = array<i64: 32, 32>}, {pipeline_mode = #tpu.pipeline_mode<synchronous>, transform_indices = @transform_6, window_bounds = array<i64: 1, 32>}, {pipeline_mode = #tpu.pipeline_mode<synchronous>, transform_indices = @transform_7, window_bounds = array<i64: 1, 32>}, {pipeline_mode = #tpu.pipeline_mode<synchronous>, transform_indices = @transform_8, window_bounds = array<i64: 1, 32>}, {transform_indices = @transform_9, window_bounds = array<i64: 256, 32>}, {transform_indices = @transform_10, window_bounds = array<i64: 256, 32>}, {transform_indices = @transform_11, window_bounds = array<i64: 256, 32>}]} {
    %c0 = arith.constant 0 : index
    %c0_0 = arith.constant 0 : index
    %0 = vector.load %arg1[%c0, %c0_0] : memref<256x32xf32, #tpu.memory_space<vmem>>, vector<256x32xf32>
    %c0_1 = arith.constant 0 : index
    %c0_2 = arith.constant 0 : index
    %1 = vector.load %arg4[%c0_1, %c0_2] : memref<32x32xf32, #tpu.memory_space<vmem>>, vector<32x32xf32>
    %cst = arith.constant dense<0.000000e+00> : vector<256x32xf32>
    %2 = tpu.matmul %0, %1, %cst {dimension_numbers = #tpu.dot_dimension_numbers<[1], [0], [0], [1], [0, 0, 1, 1], [], []>} : vector<256x32xf32>, vector<32x32xf32>, vector<256x32xf32> -> vector<256x32xf32>
    %c0_3 = arith.constant 0 : index
    %c0_4 = arith.constant 0 : index
    %3 = vector.load %arg7[%c0_3, %c0_4] : memref<1x32xf32, #tpu.memory_space<vmem>>, vector<1x32xf32>
    %4 = vector.broadcast %3 : vector<1x32xf32> to vector<256x32xf32>
    %5 = arith.addf %2, %4 : vector<256x32xf32>
    %c0_5 = arith.constant 0 : index
    %c0_6 = arith.constant 0 : index
    %6 = vector.load %arg10[%c0_5, %c0_6] : memref<256x32xf32, #tpu.memory_space<vmem>>, vector<256x32xf32>
    tpu.vector_store %arg10[%c0_5, %c0_6], %5 {strides = array<i32>} : memref<256x32xf32, #tpu.memory_space<vmem>>, vector<256x32xf32>,
    %c0_7 = arith.constant 0 : index
    %c0_8 = arith.constant 0 : index
    %7 = vector.load %arg2[%c0_7, %c0_8] : memref<256x32xf32, #tpu.memory_space<vmem>>, vector<256x32xf32>
    %c0_9 = arith.constant 0 : index
    %c0_10 = arith.constant 0 : index
    %8 = vector.load %arg5[%c0_9, %c0_10] : memref<32x32xf32, #tpu.memory_space<vmem>>, vector<32x32xf32>
    %cst_11 = arith.constant dense<0.000000e+00> : vector<256x32xf32>
    %9 = tpu.matmul %7, %8, %cst_11 {dimension_numbers = #tpu.dot_dimension_numbers<[1], [0], [0], [1], [0, 0, 1, 1], [], []>} : vector<256x32xf32>, vector<32x32xf32>, vector<256x32xf32> -> vector<256x32xf32>
    %c0_12 = arith.constant 0 : index
    %c0_13 = arith.constant 0 : index
    %10 = vector.load %arg8[%c0_12, %c0_13] : memref<1x32xf32, #tpu.memory_space<vmem>>, vector<1x32xf32>
    %11 = vector.broadcast %10 : vector<1x32xf32> to vector<256x32xf32>
    %12 = arith.addf %9, %11 : vector<256x32xf32>
    %c0_14 = arith.constant 0 : index
    %c0_15 = arith.constant 0 : index
    %13 = vector.load %arg11[%c0_14, %c0_15] : memref<256x32xf32, #tpu.memory_space<vmem>>, vector<256x32xf32>
    tpu.vector_store %arg11[%c0_14, %c0_15], %12 {strides = array<i32>} : memref<256x32xf32, #tpu.memory_space<vmem>>, vector<256x32xf32>,
    %c0_16 = arith.constant 0 : index
    %c0_17 = arith.constant 0 : index
    %14 = vector.load %arg3[%c0_16, %c0_17] : memref<256x32xf32, #tpu.memory_space<vmem>>, vector<256x32xf32>
    %c0_18 = arith.constant 0 : index
    %c0_19 = arith.constant 0 : index
    %15 = vector.load %arg6[%c0_18, %c0_19] : memref<32x32xf32, #tpu.memory_space<vmem>>, vector<32x32xf32>
    %cst_20 = arith.constant dense<0.000000e+00> : vector<256x32xf32>
    %16 = tpu.matmul %14, %15, %cst_20 {dimension_numbers = #tpu.dot_dimension_numbers<[1], [0], [0], [1], [0, 0, 1, 1], [], []>} : vector<256x32xf32>, vector<32x32xf32>, vector<256x32xf32> -> vector<256x32xf32>
    %c0_21 = arith.constant 0 : index
    %c0_22 = arith.constant 0 : index
    %17 = vector.load %arg9[%c0_21, %c0_22] : memref<1x32xf32, #tpu.memory_space<vmem>>, vector<1x32xf32>
    %18 = vector.broadcast %17 : vector<1x32xf32> to vector<256x32xf32>
    %19 = arith.addf %16, %18 : vector<256x32xf32>
    %c0_23 = arith.constant 0 : index
    %c0_24 = arith.constant 0 : index
    %20 = vector.load %arg12[%c0_23, %c0_24] : memref<256x32xf32, #tpu.memory_space<vmem>>, vector<256x32xf32>
    tpu.vector_store %arg12[%c0_23, %c0_24], %19 {strides = array<i32>} : memref<256x32xf32, #tpu.memory_space<vmem>>, vector<256x32xf32>,
    return
  }
  func.func @transform_0(%arg0: i32) -> (i32, i32) {
    %c0_i32 = arith.constant 0 : i32
    %c0_i32_0 = arith.constant 0 : i32
    return %arg0, %c0_i32 : i32, i32
  }
  func.func @transform_1(%arg0: i32) -> (i32, i32) {
    %c0_i32 = arith.constant 0 : i32
    %c0_i32_0 = arith.constant 0 : i32
    return %arg0, %c0_i32 : i32, i32
  }
  func.func @transform_2(%arg0: i32) -> (i32, i32) {
    %c0_i32 = arith.constant 0 : i32
    %c0_i32_0 = arith.constant 0 : i32
    return %arg0, %c0_i32 : i32, i32
  }
  func.func @transform_3(%arg0: i32) -> (i32, i32) {
    %c0_i32 = arith.constant 0 : i32
    %c0_i32_0 = arith.constant 0 : i32
    %c0_i32_1 = arith.constant 0 : i32
    return %c0_i32, %c0_i32_0 : i32, i32
  }
  func.func @transform_4(%arg0: i32) -> (i32, i32) {
    %c0_i32 = arith.constant 0 : i32
    %c0_i32_0 = arith.constant 0 : i32
    %c0_i32_1 = arith.constant 0 : i32
    return %c0_i32, %c0_i32_0 : i32, i32
  }
  func.func @transform_5(%arg0: i32) -> (i32, i32) {
    %c0_i32 = arith.constant 0 : i32
    %c0_i32_0 = arith.constant 0 : i32
    %c0_i32_1 = arith.constant 0 : i32
    return %c0_i32, %c0_i32_0 : i32, i32
  }
  func.func @transform_6(%arg0: i32) -> (i32, i32) {
    %c0_i32 = arith.constant 0 : i32
    %c0_i32_0 = arith.constant 0 : i32
    %c0_i32_1 = arith.constant 0 : i32
    return %c0_i32, %c0_i32_0 : i32, i32
  }
  func.func @transform_7(%arg0: i32) -> (i32, i32) {
    %c0_i32 = arith.constant 0 : i32
    %c0_i32_0 = arith.constant 0 : i32
    %c0_i32_1 = arith.constant 0 : i32
    return %c0_i32, %c0_i32_0 : i32, i32
  }
  func.func @transform_8(%arg0: i32) -> (i32, i32) {
    %c0_i32 = arith.constant 0 : i32
    %c0_i32_0 = arith.constant 0 : i32
    %c0_i32_1 = arith.constant 0 : i32
    return %c0_i32, %c0_i32_0 : i32, i32
  }
  func.func @transform_9(%arg0: i32) -> (i32, i32) {
    %c0_i32 = arith.constant 0 : i32
    %c0_i32_0 = arith.constant 0 : i32
    return %arg0, %c0_i32 : i32, i32
  }
  func.func @transform_10(%arg0: i32) -> (i32, i32) {
    %c0_i32 = arith.constant 0 : i32
    %c0_i32_0 = arith.constant 0 : i32
    return %arg0, %c0_i32 : i32, i32
  }
  func.func @transform_11(%arg0: i32) -> (i32, i32) {
    %c0_i32 = arith.constant 0 : i32
    %c0_i32_0 = arith.constant 0 : i32
    return %arg0, %c0_i32 : i32, i32
  }
}

</mosaic_0001>

<llo_original>
// kernel: tpu_custom_call.1
$region0: #{tpu_custom_call.1}
  #allocation0 [shape = 'u32[]', space=smem, size = 0x4, offset = 0x4, fixed_abs, tag = 'smem constant byte address 0x4 - core index']
  #allocation1 [shape = 'u32[144,128]{1,0:T(1,128)}', space=vmem, size = 0x12000, scoped, tag = 'internal scratch']
  %s0 = inlined_call_operand.vmem [shape: f32[256,32], index: 0, kind: input, shape index: {}]
  %s1 = inlined_call_operand.vmem [shape: f32[256,32], index: 1, kind: input, shape index: {}]
  %s2 = inlined_call_operand.vmem [shape: f32[256,32], index: 2, kind: input, shape index: {}]
  %s3 = inlined_call_operand.vmem [shape: f32[32,32], index: 3, kind: input, shape index: {}]
  %s4 = inlined_call_operand.vmem [shape: f32[32,32], index: 4, kind: input, shape index: {}]
  %s5 = inlined_call_operand.vmem [shape: f32[32,32], index: 5, kind: input, shape index: {}]
  %s6 = inlined_call_operand.vmem [shape: f32[1,32], index: 6, kind: input, shape index: {}]
  %s7 = inlined_call_operand.vmem [shape: f32[1,32], index: 7, kind: input, shape index: {}]
  %s8 = inlined_call_operand.vmem [shape: f32[1,32], index: 8, kind: input, shape index: {}]
  %s9 = inlined_call_operand.vmem [shape: f32[256,32], index: 9, kind: output, shape index: {0}]
  %s10 = inlined_call_operand.vmem [shape: f32[256,32], index: 10, kind: output, shape index: {1}]
  %s11 = inlined_call_operand.vmem [shape: f32[256,32], index: 11, kind: output, shape index: {2}]
  %12 = xla_tuple %s9, %s10, %s11
  %s13 = sld [smem:[#allocation0]]
  $region62: #{tpu_custom_call.1} parent=0
    _
  %s15 = ssub.s32 1, %s13
  %s16 = scalar_select 0, %s15, %s13
  // Predicated region
  $region2: #{tpu_custom_call.1} parent=0 // pred_check
    _
  $region3: #{tpu_custom_call.1} parent=0 // pred_check_branch
    %18 = sbr.rel (0) target = $region5
  $region4: #{tpu_custom_call.1} parent=0 // pred_region
    _
  $region5: #{tpu_custom_call.1} parent=0 // pred_fallthru
    _
  // Predicated region
  $region6: #{tpu_custom_call.1} parent=0 // pred_check
    _
  $region7: #{tpu_custom_call.1} parent=0 // pred_check_branch
    %20 = sbr.rel (0) target = $region9
  $region8: #{tpu_custom_call.1} parent=0 // pred_region
    _
  $region9: #{tpu_custom_call.1} parent=0 // pred_fallthru
    _
  // Predicated region
  $region10: #{tpu_custom_call.1} parent=0 // pred_check
    _
  $region11: #{tpu_custom_call.1} parent=0 // pred_check_branch
    %22 = sbr.rel (0) target = $region13
  $region12: #{tpu_custom_call.1} parent=0 // pred_region
    _
  $region13: #{tpu_custom_call.1} parent=0 // pred_fallthru
    _
  // Predicated region
  $region14: #{tpu_custom_call.1} parent=0 // pred_check
    _
  $region15: #{tpu_custom_call.1} parent=0 // pred_check_branch
    %24 = sbr.rel (0) target = $region17
  $region16: #{tpu_custom_call.1} parent=0 // pred_region
    _
  $region17: #{tpu_custom_call.1} parent=0 // pred_fallthru
    _
  // Predicated region
  $region18: #{tpu_custom_call.1} parent=0 // pred_check
    _
  $region19: #{tpu_custom_call.1} parent=0 // pred_check_branch
    %26 = sbr.rel (0) target = $region21
  $region20: #{tpu_custom_call.1} parent=0 // pred_region
    _
  $region21: #{tpu_custom_call.1} parent=0 // pred_fallthru
    _
  // Predicated region
  $region22: #{tpu_custom_call.1} parent=0 // pred_check
    _
  $region23: #{tpu_custom_call.1} parent=0 // pred_check_branch
    %28 = sbr.rel (0) target = $region25
  $region24: #{tpu_custom_call.1} parent=0 // pred_region
    _
  $region25: #{tpu_custom_call.1} parent=0 // pred_fallthru
    _
  // Predicated region
  $region26: #{tpu_custom_call.1} parent=0 // pred_check
    _
  $region27: #{tpu_custom_call.1} parent=0 // pred_check_branch
    %30 = sbr.rel (0) target = $region29
  $region28: #{tpu_custom_call.1} parent=0 // pred_region
    _
  $region29: #{tpu_custom_call.1} parent=0 // pred_fallthru
    _
  // Predicated region
  $region30: #{tpu_custom_call.1} parent=0 // pred_check
    _
  $region31: #{tpu_custom_call.1} parent=0 // pred_check_branch
    %32 = sbr.rel (0) target = $region33
  $region32: #{tpu_custom_call.1} parent=0 // pred_region
    _
  $region33: #{tpu_custom_call.1} parent=0 // pred_fallthru
    _
  // Predicated region
  $region34: #{tpu_custom_call.1} parent=0 // pred_check
    _
  $region35: #{tpu_custom_call.1} parent=0 // pred_check_branch
    %34 = sbr.rel (0) target = $region37
  $region36: #{tpu_custom_call.1} parent=0 // pred_region
    _
  $region37: #{tpu_custom_call.1} parent=0 // pred_fallthru
    _
  %v35 = vld [vmem:[%s0] sm:$0xff]
  %v36 = vld [vmem:[%s0 + $0x8] sm:$0xff]
  %v37 = vld [vmem:[%s0 + $0x10] sm:$0xff]
  %v38 = vld [vmem:[%s0 + $0x18] sm:$0xff]
  %v39 = vld [vmem:[%s0 + $0x20] sm:$0xff]
  %v40 = vld [vmem:[%s0 + $0x28] sm:$0xff]
  %v41 = vld [vmem:[%s0 + $0x30] sm:$0xff]
  %v42 = vld [vmem:[%s0 + $0x38] sm:$0xff]
  %v43 = vld [vmem:[%s0 + $0x40] sm:$0xff]
  %v44 = vld [vmem:[%s0 + $0x48] sm:$0xff]
  %v45 = vld [vmem:[%s0 + $0x50] sm:$0xff]
  %v46 = vld [vmem:[%s0 + $0x58] sm:$0xff]
  %v47 = vld [vmem:[%s0 + $0x60] sm:$0xff]
  %v48 = vld [vmem:[%s0 + $0x68] sm:$0xff]
  %v49 = vld [vmem:[%s0 + $0x70] sm:$0xff]
  %v50 = vld [vmem:[%s0 + $0x78] sm:$0xff]
  %v51 = vld [vmem:[%s0 + $0x80] sm:$0xff]
  %v52 = vld [vmem:[%s0 + $0x88] sm:$0xff]
  %v53 = vld [vmem:[%s0 + $0x90] sm:$0xff]
  %v54 = vld [vmem:[%s0 + $0x98] sm:$0xff]
  %v55 = vld [vmem:[%s0 + $0xa0] sm:$0xff]
  %v56 = vld [vmem:[%s0 + $0xa8] sm:$0xff]
  %v57 = vld [vmem:[%s0 + $0xb0] sm:$0xff]
  %v58 = vld [vmem:[%s0 + $0xb8] sm:$0xff]
  %v59 = vld [vmem:[%s0 + $0xc0] sm:$0xff]
  %v60 = vld [vmem:[%s0 + $0xc8] sm:$0xff]
  %v61 = vld [vmem:[%s0 + $0xd0] sm:$0xff]
  %v62 = vld [vmem:[%s0 + $0xd8] sm:$0xff]
  %v63 = vld [vmem:[%s0 + $0xe0] sm:$0xff]
  %v64 = vld [vmem:[%s0 + $0xe8] sm:$0xff]
  %v65 = vld [vmem:[%s0 + $0xf0] sm:$0xff]
  %v66 = vld [vmem:[%s0 + $0xf8] sm:$0xff]
  %v67 = vld [vmem:[%s3] sm:$0xff]
  %v68 = vld [vmem:[%s3 + $0x8] sm:$0xff]
  %v69 = vld [vmem:[%s3 + $0x10] sm:$0xff]
  %v70 = vld [vmem:[%s3 + $0x18] sm:$0xff]
  %v71 = vld [vmem:[%s6] sm:$0x1]
  %v73 = vlaneseq
  %v74 = vshrl.u32 %v73, 7
  %v75 = vsub.s32 0, %v74
  %v76 = vrot.slane %v71, %v75
  %vm78 = vcmask 261120
  %v80 = vsel %vm78, %v35, 0
  %v83 = vsel %vm78, %v36, 0
  %v86 = vsel %vm78, %v37, 0
  %v89 = vsel %vm78, %v38, 0
  %v92 = vsel %vm78, %v39, 0
  %v95 = vsel %vm78, %v40, 0
  %v98 = vsel %vm78, %v41, 0
  %v101 = vsel %vm78, %v42, 0
  %v104 = vsel %vm78, %v43, 0
  %v107 = vsel %vm78, %v44, 0
  %v110 = vsel %vm78, %v45, 0
  %v113 = vsel %vm78, %v46, 0
  %v116 = vsel %vm78, %v47, 0
  %v119 = vsel %vm78, %v48, 0
  %v122 = vsel %vm78, %v49, 0
  %v125 = vsel %vm78, %v50, 0
  %v128 = vsel %vm78, %v51, 0
  %v131 = vsel %vm78, %v52, 0
  %v134 = vsel %vm78, %v53, 0
  %v137 = vsel %vm78, %v54, 0
  %v140 = vsel %vm78, %v55, 0
  %v143 = vsel %vm78, %v56, 0
  %v146 = vsel %vm78, %v57, 0
  %v149 = vsel %vm78, %v58, 0
  %v152 = vsel %vm78, %v59, 0
  %v155 = vsel %vm78, %v60, 0
  %v158 = vsel %vm78, %v61, 0
  %v161 = vsel %vm78, %v62, 0
  %v164 = vsel %vm78, %v63, 0
  %v167 = vsel %vm78, %v64, 0
  %v170 = vsel %vm78, %v65, 0
  %v173 = vsel %vm78, %v66, 0
  %175 = vmatprep.subr.mxu0 0.0
  %176 = vmatpush1.msra.mxu0 0.0
  %177 = vmatprep.subr.mxu0 0.0
  %178 = vmatpush1.msra.mxu0 0.0
  %179 = vmatprep.subr.mxu0 0.0
  %180 = vmatpush1.msra.mxu0 0.0
  %181 = vmatprep.subr.mxu0 0.0
  %182 = vmatpush1.msra.mxu0 0.0
  %183 = vmatprep.subr.mxu0 0.0
  %184 = vmatpush1.msra.mxu0 0.0
  %185 = vmatprep.subr.mxu0 0.0
  %186 = vmatpush1.msra.mxu0 0.0
  %187 = vmatprep.subr.mxu0 0.0
  %188 = vmatpush1.msra.mxu0 0.0
  %189 = vmatprep.subr.mxu0 0.0
  %190 = vmatpush1.msra.mxu0 0.0
  %191 = vmatprep.subr.mxu0 0.0
  %192 = vmatpush1.msra.mxu0 0.0
  %193 = vmatprep.subr.mxu0 0.0
  %194 = vmatpush1.msra.mxu0 0.0
  %195 = vmatprep.subr.mxu0 0.0
  %196 = vmatpush1.msra.mxu0 0.0
  %197 = vmatprep.subr.mxu0 0.0
  %198 = vmatpush1.msra.mxu0 0.0
  %199 = vmatprep.subr.mxu0 0.0
  %200 = vmatpush1.msra.mxu0 %v70
  %201 = vmatprep.subr.mxu0 0.0
  %202 = vmatpush1.msra.mxu0 %v69
  %203 = vmatprep.subr.mxu0 0.0
  %204 = vmatpush1.msra.mxu0 %v68
  %205 = vmatprep.subr.mxu0 0.0
  %206 = vmatpush1.msra.mxu0 %v67
  %207 = vmatprep.subr.mxu0 0.0
  %208 = vmatpush2.msra.mxu0 0.0
  %209 = vmatprep.subr.mxu0 0.0
  %210 = vmatpush2.msra.mxu0 0.0
  %211 = vmatprep.subr.mxu0 0.0
  %212 = vmatpush2.msra.mxu0 0.0
  %213 = vmatprep.subr.mxu0 0.0
  %214 = vmatpush2.msra.mxu0 0.0
  %215 = vmatprep.subr.mxu0 0.0
  %216 = vmatpush2.msra.mxu0 0.0
  %217 = vmatprep.subr.mxu0 0.0
  %218 = vmatpush2.msra.mxu0 0.0
  %219 = vmatprep.subr.mxu0 0.0
  %220 = vmatpush2.msra.mxu0 0.0
  %221 = vmatprep.subr.mxu0 0.0
  %222 = vmatpush2.msra.mxu0 0.0
  %223 = vmatprep.subr.mxu0 0.0
  %224 = vmatpush2.msra.mxu0 0.0
  %225 = vmatprep.subr.mxu0 0.0
  %226 = vmatpush2.msra.mxu0 0.0
  %227 = vmatprep.subr.mxu0 0.0
  %228 = vmatpush2.msra.mxu0 0.0
  %229 = vmatprep.subr.mxu0 0.0
  %230 = vmatpush2.msra.mxu0 0.0
  %231 = vmatprep.subr.mxu0 0.0
  %232 = vmatpush2.msra.mxu0 0.0
  %233 = vmatprep.subr.mxu0 0.0
  %234 = vmatpush2.msra.mxu0 0.0
  %235 = vmatprep.subr.mxu0 0.0
  %236 = vmatpush2.msra.mxu0 0.0
  %237 = vmatprep.subr.mxu0 0.0
  %238 = vmatpush2.msra.mxu0 0.0
  %239 = vmatprep.mubr.f32.mxu0 0.0
  %240 = vmatmul.mubr.f32.gmra.mxu0 %v80
  %v241 = vpop.f32.mrf.mxu0
  %v242 = vadd.f32 %v76, %v241
  %v243 = vpop.f32.mrf.mxu0
  %244 = vmatprep.mubr.f32.mxu0 0.0
  %245 = vmatmul.mubr.f32.gmra.mxu0 %v83
  %v246 = vpop.f32.mrf.mxu0
  %v247 = vadd.f32 %v76, %v246
  %v248 = vpop.f32.mrf.mxu0
  %249 = vmatprep.mubr.f32.mxu0 0.0
  %250 = vmatmul.mubr.f32.gmra.mxu0 %v86
  %v251 = vpop.f32.mrf.mxu0
  %v252 = vadd.f32 %v76, %v251
  %v253 = vpop.f32.mrf.mxu0
  %254 = vmatprep.mubr.f32.mxu0 0.0
  %255 = vmatmul.mubr.f32.gmra.mxu0 %v89
  %v256 = vpop.f32.mrf.mxu0
  %v257 = vadd.f32 %v76, %v256
  %v258 = vpop.f32.mrf.mxu0
  %259 = vmatprep.mubr.f32.mxu0 0.0
  %260 = vmatmul.mubr.f32.gmra.mxu0 %v92
  %v261 = vpop.f32.mrf.mxu0
  %v262 = vadd.f32 %v76, %v261
  %v263 = vpop.f32.mrf.mxu0
  %264 = vmatprep.mubr.f32.mxu0 0.0
  %265 = vmatmul.mubr.f32.gmra.mxu0 %v95
  %v266 = vpop.f32.mrf.mxu0
  %v267 = vadd.f32 %v76, %v266
  %v268 = vpop.f32.mrf.mxu0
  %269 = vmatprep.mubr.f32.mxu0 0.0
  %270 = vmatmul.mubr.f32.gmra.mxu0 %v98
  %v271 = vpop.f32.mrf.mxu0
  %v272 = vadd.f32 %v76, %v271
  %v273 = vpop.f32.mrf.mxu0
  %274 = vmatprep.mubr.f32.mxu0 0.0
  %275 = vmatmul.mubr.f32.gmra.mxu0 %v101
  %v276 = vpop.f32.mrf.mxu0
  %v277 = vadd.f32 %v76, %v276
  %v278 = vpop.f32.mrf.mxu0
  %279 = vmatprep.mubr.f32.mxu0 0.0
  %280 = vmatmul.mubr.f32.gmra.mxu0 %v104
  %v281 = vpop.f32.mrf.mxu0
  %v282 = vadd.f32 %v76, %v281
  %v283 = vpop.f32.mrf.mxu0
  %284 = vmatprep.mubr.f32.mxu0 0.0
  %285 = vmatmul.mubr.f32.gmra.mxu0 %v107
  %v286 = vpop.f32.mrf.mxu0
  %v287 = vadd.f32 %v76, %v286
  %v288 = vpop.f32.mrf.mxu0
  %289 = vmatprep.mubr.f32.mxu0 0.0
  %290 = vmatmul.mubr.f32.gmra.mxu0 %v110
  %v291 = vpop.f32.mrf.mxu0
  %v292 = vadd.f32 %v76, %v291
  %v293 = vpop.f32.mrf.mxu0
  %294 = vmatprep.mubr.f32.mxu0 0.0
  %295 = vmatmul.mubr.f32.gmra.mxu0 %v113
  %v296 = vpop.f32.mrf.mxu0
  %v297 = vadd.f32 %v76, %v296
  %v298 = vpop.f32.mrf.mxu0
  %299 = vmatprep.mubr.f32.mxu0 0.0
  %300 = vmatmul.mubr.f32.gmra.mxu0 %v116
  %v301 = vpop.f32.mrf.mxu0
  %v302 = vadd.f32 %v76, %v301
  %v303 = vpop.f32.mrf.mxu0
  %304 = vmatprep.mubr.f32.mxu0 0.0
  %305 = vmatmul.mubr.f32.gmra.mxu0 %v119
  %v306 = vpop.f32.mrf.mxu0
  %v307 = vadd.f32 %v76, %v306
  %v308 = vpop.f32.mrf.mxu0
  %309 = vmatprep.mubr.f32.mxu0 0.0
  %310 = vmatmul.mubr.f32.gmra.mxu0 %v122
  %v311 = vpop.f32.mrf.mxu0
  %v312 = vadd.f32 %v76, %v311
  %v313 = vpop.f32.mrf.mxu0
  %314 = vmatprep.mubr.f32.mxu0 0.0
  %315 = vmatmul.mubr.f32.gmra.mxu0 %v125
  %v316 = vpop.f32.mrf.mxu0
  %v317 = vadd.f32 %v76, %v316
  %v318 = vpop.f32.mrf.mxu0
  %319 = vmatprep.mubr.f32.mxu0 0.0
  %320 = vmatmul.mubr.f32.gmra.mxu0 %v128
  %v321 = vpop.f32.mrf.mxu0
  %v322 = vadd.f32 %v76, %v321
  %v323 = vpop.f32.mrf.mxu0
  %324 = vmatprep.mubr.f32.mxu0 0.0
  %325 = vmatmul.mubr.f32.gmra.mxu0 %v131
  %v326 = vpop.f32.mrf.mxu0
  %v327 = vadd.f32 %v76, %v326
  %v328 = vpop.f32.mrf.mxu0
  %329 = vmatprep.mubr.f32.mxu0 0.0
  %330 = vmatmul.mubr.f32.gmra.mxu0 %v134
  %v331 = vpop.f32.mrf.mxu0
  %v332 = vadd.f32 %v76, %v331
  %v333 = vpop.f32.mrf.mxu0
  %334 = vmatprep.mubr.f32.mxu0 0.0
  %335 = vmatmul.mubr.f32.gmra.mxu0 %v137
  %v336 = vpop.f32.mrf.mxu0
  %v337 = vadd.f32 %v76, %v336
  %v338 = vpop.f32.mrf.mxu0
  %339 = vmatprep.mubr.f32.mxu0 0.0
  %340 = vmatmul.mubr.f32.gmra.mxu0 %v140
  %v341 = vpop.f32.mrf.mxu0
  %v342 = vadd.f32 %v76, %v341
  %v343 = vpop.f32.mrf.mxu0
  %344 = vmatprep.mubr.f32.mxu0 0.0
  %345 = vmatmul.mubr.f32.gmra.mxu0 %v143
  %v346 = vpop.f32.mrf.mxu0
  %v347 = vadd.f32 %v76, %v346
  %v348 = vpop.f32.mrf.mxu0
  %349 = vmatprep.mubr.f32.mxu0 0.0
  %350 = vmatmul.mubr.f32.gmra.mxu0 %v146
  %v351 = vpop.f32.mrf.mxu0
  %v352 = vadd.f32 %v76, %v351
  %v353 = vpop.f32.mrf.mxu0
  %354 = vmatprep.mubr.f32.mxu0 0.0
  %355 = vmatmul.mubr.f32.gmra.mxu0 %v149
  %v356 = vpop.f32.mrf.mxu0
  %v357 = vadd.f32 %v76, %v356
  %v358 = vpop.f32.mrf.mxu0
  %359 = vmatprep.mubr.f32.mxu0 0.0
  %360 = vmatmul.mubr.f32.gmra.mxu0 %v152
  %v361 = vpop.f32.mrf.mxu0
  %v362 = vadd.f32 %v76, %v361
  %v363 = vpop.f32.mrf.mxu0
  %364 = vmatprep.mubr.f32.mxu0 0.0
  %365 = vmatmul.mubr.f32.gmra.mxu0 %v155
  %v366 = vpop.f32.mrf.mxu0
  %v367 = vadd.f32 %v76, %v366
  %v368 = vpop.f32.mrf.mxu0
  %369 = vmatprep.mubr.f32.mxu0 0.0
  %370 = vmatmul.mubr.f32.gmra.mxu0 %v158
  %v371 = vpop.f32.mrf.mxu0
  %v372 = vadd.f32 %v76, %v371
  %v373 = vpop.f32.mrf.mxu0
  %374 = vmatprep.mubr.f32.mxu0 0.0
  %375 = vmatmul.mubr.f32.gmra.mxu0 %v161
  %v376 = vpop.f32.mrf.mxu0
  %v377 = vadd.f32 %v76, %v376
  %v378 = vpop.f32.mrf.mxu0
  %379 = vmatprep.mubr.f32.mxu0 0.0
  %380 = vmatmul.mubr.f32.gmra.mxu0 %v164
  %v381 = vpop.f32.mrf.mxu0
  %v382 = vadd.f32 %v76, %v381
  %v383 = vpop.f32.mrf.mxu0
  %384 = vmatprep.mubr.f32.mxu0 0.0
  %385 = vmatmul.mubr.f32.gmra.mxu0 %v167
  %v386 = vpop.f32.mrf.mxu0
  %v387 = vadd.f32 %v76, %v386
  %v388 = vpop.f32.mrf.mxu0
  %389 = vmatprep.mubr.f32.mxu0 0.0
  %390 = vmatmul.mubr.f32.gmra.mxu0 %v170
  %v391 = vpop.f32.mrf.mxu0
  %v392 = vadd.f32 %v76, %v391
  %v393 = vpop.f32.mrf.mxu0
  %394 = vmatprep.mubr.f32.mxu0 0.0
  %395 = vmatmul.mubr.f32.gmra.mxu0 %v173
  %v396 = vpop.f32.mrf.mxu0
  %v397 = vadd.f32 %v76, %v396
  %v398 = vpop.f32.mrf.mxu0
  %399 = vdwg.mxu0
  %400 = vst.msk [vmem:[%s9] sm:$0xff] %vm78, %v242
  %401 = vst.msk [vmem:[%s9 + $0x8] sm:$0xff] %vm78, %v247
  %402 = vst.msk [vmem:[%s9 + $0x10] sm:$0xff] %vm78, %v252
  %403 = vst.msk [vmem:[%s9 + $0x18] sm:$0xff] %vm78, %v257
  %404 = vst.msk [vmem:[%s9 + $0x20] sm:$0xff] %vm78, %v262
  %405 = vst.msk [vmem:[%s9 + $0x28] sm:$0xff] %vm78, %v267
  %406 = vst.msk [vmem:[%s9 + $0x30] sm:$0xff] %vm78, %v272
  %407 = vst.msk [vmem:[%s9 + $0x38] sm:$0xff] %vm78, %v277
  %408 = vst.msk [vmem:[%s9 + $0x40] sm:$0xff] %vm78, %v282
  %409 = vst.msk [vmem:[%s9 + $0x48] sm:$0xff] %vm78, %v287
  %410 = vst.msk [vmem:[%s9 + $0x50] sm:$0xff] %vm78, %v292
  %411 = vst.msk [vmem:[%s9 + $0x58] sm:$0xff] %vm78, %v297
  %412 = vst.msk [vmem:[%s9 + $0x60] sm:$0xff] %vm78, %v302
  %413 = vst.msk [vmem:[%s9 + $0x68] sm:$0xff] %vm78, %v307
  %414 = vst.msk [vmem:[%s9 + $0x70] sm:$0xff] %vm78, %v312
  %415 = vst.msk [vmem:[%s9 + $0x78] sm:$0xff] %vm78, %v317
  %416 = vst.msk [vmem:[%s9 + $0x80] sm:$0xff] %vm78, %v322
  %417 = vst.msk [vmem:[%s9 + $0x88] sm:$0xff] %vm78, %v327
  %418 = vst.msk [vmem:[%s9 + $0x90] sm:$0xff] %vm78, %v332
  %419 = vst.msk [vmem:[%s9 + $0x98] sm:$0xff] %vm78, %v337
  %420 = vst.msk [vmem:[%s9 + $0xa0] sm:$0xff] %vm78, %v342
  %421 = vst.msk [vmem:[%s9 + $0xa8] sm:$0xff] %vm78, %v347
  %422 = vst.msk [vmem:[%s9 + $0xb0] sm:$0xff] %vm78, %v352
  %423 = vst.msk [vmem:[%s9 + $0xb8] sm:$0xff] %vm78, %v357
  %424 = vst.msk [vmem:[%s9 + $0xc0] sm:$0xff] %vm78, %v362
  %425 = vst.msk [vmem:[%s9 + $0xc8] sm:$0xff] %vm78, %v367
  %426 = vst.msk [vmem:[%s9 + $0xd0] sm:$0xff] %vm78, %v372
  %427 = vst.msk [vmem:[%s9 + $0xd8] sm:$0xff] %vm78, %v377
  %428 = vst.msk [vmem:[%s9 + $0xe0] sm:$0xff] %vm78, %v382
  %429 = vst.msk [vmem:[%s9 + $0xe8] sm:$0xff] %vm78, %v387
  %430 = vst.msk [vmem:[%s9 + $0xf0] sm:$0xff] %vm78, %v392
  %431 = vst.msk [vmem:[%s9 + $0xf8] sm:$0xff] %vm78, %v397
  %v432 = vld [vmem:[%s1] sm:$0xff]
  %v433 = vld [vmem:[%s1 + $0x8] sm:$0xff]
  %v434 = vld [vmem:[%s1 + $0x10] sm:$0xff]
  %v435 = vld [vmem:[%s1 + $0x18] sm:$0xff]
  %v436 = vld [vmem:[%s1 + $0x20] sm:$0xff]
  %v437 = vld [vmem:[%s1 + $0x28] sm:$0xff]
  %v438 = vld [vmem:[%s1 + $0x30] sm:$0xff]
  %v439 = vld [vmem:[%s1 + $0x38] sm:$0xff]
  %v440 = vld [vmem:[%s1 + $0x40] sm:$0xff]
  %v441 = vld [vmem:[%s1 + $0x48] sm:$0xff]
  %v442 = vld [vmem:[%s1 + $0x50] sm:$0xff]
  %v443 = vld [vmem:[%s1 + $0x58] sm:$0xff]
  %v444 = vld [vmem:[%s1 + $0x60] sm:$0xff]
  %v445 = vld [vmem:[%s1 + $0x68] sm:$0xff]
  %v446 = vld [vmem:[%s1 + $0x70] sm:$0xff]
  %v447 = vld [vmem:[%s1 + $0x78] sm:$0xff]
  %v448 = vld [vmem:[%s1 + $0x80] sm:$0xff]
  %v449 = vld [vmem:[%s1 + $0x88] sm:$0xff]
  %v450 = vld [vmem:[%s1 + $0x90] sm:$0xff]
  %v451 = vld [vmem:[%s1 + $0x98] sm:$0xff]
  %v452 = vld [vmem:[%s1 + $0xa0] sm:$0xff]
  %v453 = vld [vmem:[%s1 + $0xa8] sm:$0xff]
  %v454 = vld [vmem:[%s1 + $0xb0] sm:$0xff]
  %v455 = vld [vmem:[%s1 + $0xb8] sm:$0xff]
  %v456 = vld [vmem:[%s1 + $0xc0] sm:$0xff]
  %v457 = vld [vmem:[%s1 + $0xc8] sm:$0xff]
  %v458 = vld [vmem:[%s1 + $0xd0] sm:$0xff]
  %v459 = vld [vmem:[%s1 + $0xd8] sm:$0xff]
  %v460 = vld [vmem:[%s1 + $0xe0] sm:$0xff]
  %v461 = vld [vmem:[%s1 + $0xe8] sm:$0xff]
  %v462 = vld [vmem:[%s1 + $0xf0] sm:$0xff]
  %v463 = vld [vmem:[%s1 + $0xf8] sm:$0xff]
  %v464 = vld [vmem:[%s4] sm:$0xff]
  %v465 = vld [vmem:[%s4 + $0x8] sm:$0xff]
  %v466 = vld [vmem:[%s4 + $0x10] sm:$0xff]
  %v467 = vld [vmem:[%s4 + $0x18] sm:$0xff]
  %v468 = vld [vmem:[%s7] sm:$0x1]
  %v470 = vlaneseq
  %v471 = vshrl.u32 %v470, 7
  %v472 = vsub.s32 0, %v471
  %v473 = vrot.slane %v468, %v472
  %v476 = vsel %vm78, %v432, 0
  %v479 = vsel %vm78, %v433, 0
  %v482 = vsel %vm78, %v434, 0
  %v485 = vsel %vm78, %v435, 0
  %v488 = vsel %vm78, %v436, 0
  %v491 = vsel %vm78, %v437, 0
  %v494 = vsel %vm78, %v438, 0
  %v497 = vsel %vm78, %v439, 0
  %v500 = vsel %vm78, %v440, 0
  %v503 = vsel %vm78, %v441, 0
  %v506 = vsel %vm78, %v442, 0
  %v509 = vsel %vm78, %v443, 0
  %v512 = vsel %vm78, %v444, 0
  %v515 = vsel %vm78, %v445, 0
  %v518 = vsel %vm78, %v446, 0
  %v521 = vsel %vm78, %v447, 0
  %v524 = vsel %vm78, %v448, 0
  %v527 = vsel %vm78, %v449, 0
  %v530 = vsel %vm78, %v450, 0
  %v533 = vsel %vm78, %v451, 0
  %v536 = vsel %vm78, %v452, 0
  %v539 = vsel %vm78, %v453, 0
  %v542 = vsel %vm78, %v454, 0
  %v545 = vsel %vm78, %v455, 0
  %v548 = vsel %vm78, %v456, 0
  %v551 = vsel %vm78, %v457, 0
  %v554 = vsel %vm78, %v458, 0
  %v557 = vsel %vm78, %v459, 0
  %v560 = vsel %vm78, %v460, 0
  %v563 = vsel %vm78, %v461, 0
  %v566 = vsel %vm78, %v462, 0
  %v569 = vsel %vm78, %v463, 0
  %571 = vmatprep.subr.mxu0 0.0
  %572 = vmatpush1.msra.mxu0 0.0
  %573 = vmatprep.subr.mxu0 0.0
  %574 = vmatpush1.msra.mxu0 0.0
  %575 = vmatprep.subr.mxu0 0.0
  %576 = vmatpush1.msra.mxu0 0.0
  %577 = vmatprep.subr.mxu0 0.0
  %578 = vmatpush1.msra.mxu0 0.0
  %579 = vmatprep.subr.mxu0 0.0
  %580 = vmatpush1.msra.mxu0 0.0
  %581 = vmatprep.subr.mxu0 0.0
  %582 = vmatpush1.msra.mxu0 0.0
  %583 = vmatprep.subr.mxu0 0.0
  %584 = vmatpush1.msra.mxu0 0.0
  %585 = vmatprep.subr.mxu0 0.0
  %586 = vmatpush1.msra.mxu0 0.0
  %587 = vmatprep.subr.mxu0 0.0
  %588 = vmatpush1.msra.mxu0 0.0
  %589 = vmatprep.subr.mxu0 0.0
  %590 = vmatpush1.msra.mxu0 0.0
  %591 = vmatprep.subr.mxu0 0.0
  %592 = vmatpush1.msra.mxu0 0.0
  %593 = vmatprep.subr.mxu0 0.0
  %594 = vmatpush1.msra.mxu0 0.0
  %595 = vmatprep.subr.mxu0 0.0
  %596 = vmatpush1.msra.mxu0 %v467
  %597 = vmatprep.subr.mxu0 0.0
  %598 = vmatpush1.msra.mxu0 %v466
  %599 = vmatprep.subr.mxu0 0.0
  %600 = vmatpush1.msra.mxu0 %v465
  %601 = vmatprep.subr.mxu0 0.0
  %602 = vmatpush1.msra.mxu0 %v464
  %603 = vmatprep.subr.mxu0 0.0
  %604 = vmatpush2.msra.mxu0 0.0
  %605 = vmatprep.subr.mxu0 0.0
  %606 = vmatpush2.msra.mxu0 0.0
  %607 = vmatprep.subr.mxu0 0.0
  %608 = vmatpush2.msra.mxu0 0.0
  %609 = vmatprep.subr.mxu0 0.0
  %610 = vmatpush2.msra.mxu0 0.0
  %611 = vmatprep.subr.mxu0 0.0
  %612 = vmatpush2.msra.mxu0 0.0
  %613 = vmatprep.subr.mxu0 0.0
  %614 = vmatpush2.msra.mxu0 0.0
  %615 = vmatprep.subr.mxu0 0.0
  %616 = vmatpush2.msra.mxu0 0.0
  %617 = vmatprep.subr.mxu0 0.0
  %618 = vmatpush2.msra.mxu0 0.0
  %619 = vmatprep.subr.mxu0 0.0
  %620 = vmatpush2.msra.mxu0 0.0
  %621 = vmatprep.subr.mxu0 0.0
  %622 = vmatpush2.msra.mxu0 0.0
  %623 = vmatprep.subr.mxu0 0.0
  %624 = vmatpush2.msra.mxu0 0.0
  %625 = vmatprep.subr.mxu0 0.0
  %626 = vmatpush2.msra.mxu0 0.0
  %627 = vmatprep.subr.mxu0 0.0
  %628 = vmatpush2.msra.mxu0 0.0
  %629 = vmatprep.subr.mxu0 0.0
  %630 = vmatpush2.msra.mxu0 0.0
  %631 = vmatprep.subr.mxu0 0.0
  %632 = vmatpush2.msra.mxu0 0.0
  %633 = vmatprep.subr.mxu0 0.0
  %634 = vmatpush2.msra.mxu0 0.0
  %635 = vmatprep.mubr.f32.mxu0 0.0
  %636 = vmatmul.mubr.f32.gmra.mxu0 %v476
  %v637 = vpop.f32.mrf.mxu0
  %v638 = vadd.f32 %v473, %v637
  %v639 = vpop.f32.mrf.mxu0
  %640 = vmatprep.mubr.f32.mxu0 0.0
  %641 = vmatmul.mubr.f32.gmra.mxu0 %v479
  %v642 = vpop.f32.mrf.mxu0
  %v643 = vadd.f32 %v473, %v642
  %v644 = vpop.f32.mrf.mxu0
  %645 = vmatprep.mubr.f32.mxu0 0.0
  %646 = vmatmul.mubr.f32.gmra.mxu0 %v482
  %v647 = vpop.f32.mrf.mxu0
  %v648 = vadd.f32 %v473, %v647
  %v649 = vpop.f32.mrf.mxu0
  %650 = vmatprep.mubr.f32.mxu0 0.0
  %651 = vmatmul.mubr.f32.gmra.mxu0 %v485
  %v652 = vpop.f32.mrf.mxu0
  %v653 = vadd.f32 %v473, %v652
  %v654 = vpop.f32.mrf.mxu0
  %655 = vmatprep.mubr.f32.mxu0 0.0
  %656 = vmatmul.mubr.f32.gmra.mxu0 %v488
  %v657 = vpop.f32.mrf.mxu0
  %v658 = vadd.f32 %v473, %v657
  %v659 = vpop.f32.mrf.mxu0
  %660 = vmatprep.mubr.f32.mxu0 0.0
  %661 = vmatmul.mubr.f32.gmra.mxu0 %v491
  %v662 = vpop.f32.mrf.mxu0
  %v663 = vadd.f32 %v473, %v662
  %v664 = vpop.f32.mrf.mxu0
  %665 = vmatprep.mubr.f32.mxu0 0.0
  %666 = vmatmul.mubr.f32.gmra.mxu0 %v494
  %v667 = vpop.f32.mrf.mxu0
  %v668 = vadd.f32 %v473, %v667
  %v669 = vpop.f32.mrf.mxu0
  %670 = vmatprep.mubr.f32.mxu0 0.0
  %671 = vmatmul.mubr.f32.gmra.mxu0 %v497
  %v672 = vpop.f32.mrf.mxu0
  %v673 = vadd.f32 %v473, %v672
  %v674 = vpop.f32.mrf.mxu0
  %675 = vmatprep.mubr.f32.mxu0 0.0
  %676 = vmatmul.mubr.f32.gmra.mxu0 %v500
  %v677 = vpop.f32.mrf.mxu0
  %v678 = vadd.f32 %v473, %v677
  %v679 = vpop.f32.mrf.mxu0
  %680 = vmatprep.mubr.f32.mxu0 0.0
  %681 = vmatmul.mubr.f32.gmra.mxu0 %v503
  %v682 = vpop.f32.mrf.mxu0
  %v683 = vadd.f32 %v473, %v682
  %v684 = vpop.f32.mrf.mxu0
  %685 = vmatprep.mubr.f32.mxu0 0.0
  %686 = vmatmul.mubr.f32.gmra.mxu0 %v506
  %v687 = vpop.f32.mrf.mxu0
  %v688 = vadd.f32 %v473, %v687
  %v689 = vpop.f32.mrf.mxu0
  %690 = vmatprep.mubr.f32.mxu0 0.0
  %691 = vmatmul.mubr.f32.gmra.mxu0 %v509
  %v692 = vpop.f32.mrf.mxu0
  %v693 = vadd.f32 %v473, %v692
  %v694 = vpop.f32.mrf.mxu0
  %695 = vmatprep.mubr.f32.mxu0 0.0
  %696 = vmatmul.mubr.f32.gmra.mxu0 %v512
  %v697 = vpop.f32.mrf.mxu0
  %v698 = vadd.f32 %v473, %v697
  %v699 = vpop.f32.mrf.mxu0
  %700 = vmatprep.mubr.f32.mxu0 0.0
  %701 = vmatmul.mubr.f32.gmra.mxu0 %v515
  %v702 = vpop.f32.mrf.mxu0
  %v703 = vadd.f32 %v473, %v702
  %v704 = vpop.f32.mrf.mxu0
  %705 = vmatprep.mubr.f32.mxu0 0.0
  %706 = vmatmul.mubr.f32.gmra.mxu0 %v518
  %v707 = vpop.f32.mrf.mxu0
  %v708 = vadd.f32 %v473, %v707
  %v709 = vpop.f32.mrf.mxu0
  %710 = vmatprep.mubr.f32.mxu0 0.0
  %711 = vmatmul.mubr.f32.gmra.mxu0 %v521
  %v712 = vpop.f32.mrf.mxu0
  %v713 = vadd.f32 %v473, %v712
  %v714 = vpop.f32.mrf.mxu0
  %715 = vmatprep.mubr.f32.mxu0 0.0
  %716 = vmatmul.mubr.f32.gmra.mxu0 %v524
  %v717 = vpop.f32.mrf.mxu0
  %v718 = vadd.f32 %v473, %v717
  %v719 = vpop.f32.mrf.mxu0
  %720 = vmatprep.mubr.f32.mxu0 0.0
  %721 = vmatmul.mubr.f32.gmra.mxu0 %v527
  %v722 = vpop.f32.mrf.mxu0
  %v723 = vadd.f32 %v473, %v722
  %v724 = vpop.f32.mrf.mxu0
  %725 = vmatprep.mubr.f32.mxu0 0.0
  %726 = vmatmul.mubr.f32.gmra.mxu0 %v530
  %v727 = vpop.f32.mrf.mxu0
  %v728 = vadd.f32 %v473, %v727
  %v729 = vpop.f32.mrf.mxu0
  %730 = vmatprep.mubr.f32.mxu0 0.0
  %731 = vmatmul.mubr.f32.gmra.mxu0 %v533
  %v732 = vpop.f32.mrf.mxu0
  %v733 = vadd.f32 %v473, %v732
  %v734 = vpop.f32.mrf.mxu0
  %735 = vmatprep.mubr.f32.mxu0 0.0
  %736 = vmatmul.mubr.f32.gmra.mxu0 %v536
  %v737 = vpop.f32.mrf.mxu0
  %v738 = vadd.f32 %v473, %v737
  %v739 = vpop.f32.mrf.mxu0
  %740 = vmatprep.mubr.f32.mxu0 0.0
  %741 = vmatmul.mubr.f32.gmra.mxu0 %v539
  %v742 = vpop.f32.mrf.mxu0
  %v743 = vadd.f32 %v473, %v742
  %v744 = vpop.f32.mrf.mxu0
  %745 = vmatprep.mubr.f32.mxu0 0.0
  %746 = vmatmul.mubr.f32.gmra.mxu0 %v542
  %v747 = vpop.f32.mrf.mxu0
  %v748 = vadd.f32 %v473, %v747
  %v749 = vpop.f32.mrf.mxu0
  %750 = vmatprep.mubr.f32.mxu0 0.0
  %751 = vmatmul.mubr.f32.gmra.mxu0 %v545
  %v752 = vpop.f32.mrf.mxu0
  %v753 = vadd.f32 %v473, %v752
  %v754 = vpop.f32.mrf.mxu0
  %755 = vmatprep.mubr.f32.mxu0 0.0
  %756 = vmatmul.mubr.f32.gmra.mxu0 %v548
  %v757 = vpop.f32.mrf.mxu0
  %v758 = vadd.f32 %v473, %v757
  %v759 = vpop.f32.mrf.mxu0
  %760 = vmatprep.mubr.f32.mxu0 0.0
  %761 = vmatmul.mubr.f32.gmra.mxu0 %v551
  %v762 = vpop.f32.mrf.mxu0
  %v763 = vadd.f32 %v473, %v762
  %v764 = vpop.f32.mrf.mxu0
  %765 = vmatprep.mubr.f32.mxu0 0.0
  %766 = vmatmul.mubr.f32.gmra.mxu0 %v554
  %v767 = vpop.f32.mrf.mxu0
  %v768 = vadd.f32 %v473, %v767
  %v769 = vpop.f32.mrf.mxu0
  %770 = vmatprep.mubr.f32.mxu0 0.0
  %771 = vmatmul.mubr.f32.gmra.mxu0 %v557
  %v772 = vpop.f32.mrf.mxu0
  %v773 = vadd.f32 %v473, %v772
  %v774 = vpop.f32.mrf.mxu0
  %775 = vmatprep.mubr.f32.mxu0 0.0
  %776 = vmatmul.mubr.f32.gmra.mxu0 %v560
  %v777 = vpop.f32.mrf.mxu0
  %v778 = vadd.f32 %v473, %v777
  %v779 = vpop.f32.mrf.mxu0
  %780 = vmatprep.mubr.f32.mxu0 0.0
  %781 = vmatmul.mubr.f32.gmra.mxu0 %v563
  %v782 = vpop.f32.mrf.mxu0
  %v783 = vadd.f32 %v473, %v782
  %v784 = vpop.f32.mrf.mxu0
  %785 = vmatprep.mubr.f32.mxu0 0.0
  %786 = vmatmul.mubr.f32.gmra.mxu0 %v566
  %v787 = vpop.f32.mrf.mxu0
  %v788 = vadd.f32 %v473, %v787
  %v789 = vpop.f32.mrf.mxu0
  %790 = vmatprep.mubr.f32.mxu0 0.0
  %791 = vmatmul.mubr.f32.gmra.mxu0 %v569
  %v792 = vpop.f32.mrf.mxu0
  %v793 = vadd.f32 %v473, %v792
  %v794 = vpop.f32.mrf.mxu0
  %795 = vdwg.mxu0
  %796 = vst.msk [vmem:[%s10] sm:$0xff] %vm78, %v638
  %797 = vst.msk [vmem:[%s10 + $0x8] sm:$0xff] %vm78, %v643
  %798 = vst.msk [vmem:[%s10 + $0x10] sm:$0xff] %vm78, %v648
  %799 = vst.msk [vmem:[%s10 + $0x18] sm:$0xff] %vm78, %v653
  %800 = vst.msk [vmem:[%s10 + $0x20] sm:$0xff] %vm78, %v658
  %801 = vst.msk [vmem:[%s10 + $0x28] sm:$0xff] %vm78, %v663
  %802 = vst.msk [vmem:[%s10 + $0x30] sm:$0xff] %vm78, %v668
  %803 = vst.msk [vmem:[%s10 + $0x38] sm:$0xff] %vm78, %v673
  %804 = vst.msk [vmem:[%s10 + $0x40] sm:$0xff] %vm78, %v678
  %805 = vst.msk [vmem:[%s10 + $0x48] sm:$0xff] %vm78, %v683
  %806 = vst.msk [vmem:[%s10 + $0x50] sm:$0xff] %vm78, %v688
  %807 = vst.msk [vmem:[%s10 + $0x58] sm:$0xff] %vm78, %v693
  %808 = vst.msk [vmem:[%s10 + $0x60] sm:$0xff] %vm78, %v698
  %809 = vst.msk [vmem:[%s10 + $0x68] sm:$0xff] %vm78, %v703
  %810 = vst.msk [vmem:[%s10 + $0x70] sm:$0xff] %vm78, %v708
  %811 = vst.msk [vmem:[%s10 + $0x78] sm:$0xff] %vm78, %v713
  %812 = vst.msk [vmem:[%s10 + $0x80] sm:$0xff] %vm78, %v718
  %813 = vst.msk [vmem:[%s10 + $0x88] sm:$0xff] %vm78, %v723
  %814 = vst.msk [vmem:[%s10 + $0x90] sm:$0xff] %vm78, %v728
  %815 = vst.msk [vmem:[%s10 + $0x98] sm:$0xff] %vm78, %v733
  %816 = vst.msk [vmem:[%s10 + $0xa0] sm:$0xff] %vm78, %v738
  %817 = vst.msk [vmem:[%s10 + $0xa8] sm:$0xff] %vm78, %v743
  %818 = vst.msk [vmem:[%s10 + $0xb0] sm:$0xff] %vm78, %v748
  %819 = vst.msk [vmem:[%s10 + $0xb8] sm:$0xff] %vm78, %v753
  %820 = vst.msk [vmem:[%s10 + $0xc0] sm:$0xff] %vm78, %v758
  %821 = vst.msk [vmem:[%s10 + $0xc8] sm:$0xff] %vm78, %v763
  %822 = vst.msk [vmem:[%s10 + $0xd0] sm:$0xff] %vm78, %v768
  %823 = vst.msk [vmem:[%s10 + $0xd8] sm:$0xff] %vm78, %v773
  %824 = vst.msk [vmem:[%s10 + $0xe0] sm:$0xff] %vm78, %v778
  %825 = vst.msk [vmem:[%s10 + $0xe8] sm:$0xff] %vm78, %v783
  %826 = vst.msk [vmem:[%s10 + $0xf0] sm:$0xff] %vm78, %v788
  %827 = vst.msk [vmem:[%s10 + $0xf8] sm:$0xff] %vm78, %v793
  %v828 = vld [vmem:[%s2] sm:$0xff]
  %v829 = vld [vmem:[%s2 + $0x8] sm:$0xff]
  %v830 = vld [vmem:[%s2 + $0x10] sm:$0xff]
  %v831 = vld [vmem:[%s2 + $0x18] sm:$0xff]
  %v832 = vld [vmem:[%s2 + $0x20] sm:$0xff]
  %v833 = vld [vmem:[%s2 + $0x28] sm:$0xff]
  %v834 = vld [vmem:[%s2 + $0x30] sm:$0xff]
  %v835 = vld [vmem:[%s2 + $0x38] sm:$0xff]
  %v836 = vld [vmem:[%s2 + $0x40] sm:$0xff]
  %v837 = vld [vmem:[%s2 + $0x48] sm:$0xff]
  %v838 = vld [vmem:[%s2 + $0x50] sm:$0xff]
  %v839 = vld [vmem:[%s2 + $0x58] sm:$0xff]
  %v840 = vld [vmem:[%s2 + $0x60] sm:$0xff]
  %v841 = vld [vmem:[%s2 + $0x68] sm:$0xff]
  %v842 = vld [vmem:[%s2 + $0x70] sm:$0xff]
  %v843 = vld [vmem:[%s2 + $0x78] sm:$0xff]
  %v844 = vld [vmem:[%s2 + $0x80] sm:$0xff]
  %v845 = vld [vmem:[%s2 + $0x88] sm:$0xff]
  %v846 = vld [vmem:[%s2 + $0x90] sm:$0xff]
  %v847 = vld [vmem:[%s2 + $0x98] sm:$0xff]
  %v848 = vld [vmem:[%s2 + $0xa0] sm:$0xff]
  %v849 = vld [vmem:[%s2 + $0xa8] sm:$0xff]
  %v850 = vld [vmem:[%s2 + $0xb0] sm:$0xff]
  %v851 = vld [vmem:[%s2 + $0xb8] sm:$0xff]
  %v852 = vld [vmem:[%s2 + $0xc0] sm:$0xff]
  %v853 = vld [vmem:[%s2 + $0xc8] sm:$0xff]
  %v854 = vld [vmem:[%s2 + $0xd0] sm:$0xff]
  %v855 = vld [vmem:[%s2 + $0xd8] sm:$0xff]
  %v856 = vld [vmem:[%s2 + $0xe0] sm:$0xff]
  %v857 = vld [vmem:[%s2 + $0xe8] sm:$0xff]
  %v858 = vld [vmem:[%s2 + $0xf0] sm:$0xff]
  %v859 = vld [vmem:[%s2 + $0xf8] sm:$0xff]
  %v860 = vld [vmem:[%s5] sm:$0xff]
  %v861 = vld [vmem:[%s5 + $0x8] sm:$0xff]
  %v862 = vld [vmem:[%s5 + $0x10] sm:$0xff]
  %v863 = vld [vmem:[%s5 + $0x18] sm:$0xff]
  %v864 = vld [vmem:[%s8] sm:$0x1]
  %v866 = vlaneseq
  %v867 = vshrl.u32 %v866, 7
  %v868 = vsub.s32 0, %v867
  %v869 = vrot.slane %v864, %v868
  %v872 = vsel %vm78, %v828, 0
  %v875 = vsel %vm78, %v829, 0
  %v878 = vsel %vm78, %v830, 0
  %v881 = vsel %vm78, %v831, 0
  %v884 = vsel %vm78, %v832, 0
  %v887 = vsel %vm78, %v833, 0
  %v890 = vsel %vm78, %v834, 0
  %v893 = vsel %vm78, %v835, 0
  %v896 = vsel %vm78, %v836, 0
  %v899 = vsel %vm78, %v837, 0
  %v902 = vsel %vm78, %v838, 0
  %v905 = vsel %vm78, %v839, 0
  %v908 = vsel %vm78, %v840, 0
  %v911 = vsel %vm78, %v841, 0
  %v914 = vsel %vm78, %v842, 0
  %v917 = vsel %vm78, %v843, 0
  %v920 = vsel %vm78, %v844, 0
  %v923 = vsel %vm78, %v845, 0
  %v926 = vsel %vm78, %v846, 0
  %v929 = vsel %vm78, %v847, 0
  %v932 = vsel %vm78, %v848, 0
  %v935 = vsel %vm78, %v849, 0
  %v938 = vsel %vm78, %v850, 0
  %v941 = vsel %vm78, %v851, 0
  %v944 = vsel %vm78, %v852, 0
  %v947 = vsel %vm78, %v853, 0
  %v950 = vsel %vm78, %v854, 0
  %v953 = vsel %vm78, %v855, 0
  %v956 = vsel %vm78, %v856, 0
  %v959 = vsel %vm78, %v857, 0
  %v962 = vsel %vm78, %v858, 0
  %v965 = vsel %vm78, %v859, 0
  %967 = vmatprep.subr.mxu0 0.0
  %968 = vmatpush1.msra.mxu0 0.0
  %969 = vmatprep.subr.mxu0 0.0
  %970 = vmatpush1.msra.mxu0 0.0
  %971 = vmatprep.subr.mxu0 0.0
  %972 = vmatpush1.msra.mxu0 0.0
  %973 = vmatprep.subr.mxu0 0.0
  %974 = vmatpush1.msra.mxu0 0.0
  %975 = vmatprep.subr.mxu0 0.0
  %976 = vmatpush1.msra.mxu0 0.0
  %977 = vmatprep.subr.mxu0 0.0
  %978 = vmatpush1.msra.mxu0 0.0
  %979 = vmatprep.subr.mxu0 0.0
  %980 = vmatpush1.msra.mxu0 0.0
  %981 = vmatprep.subr.mxu0 0.0
  %982 = vmatpush1.msra.mxu0 0.0
  %983 = vmatprep.subr.mxu0 0.0
  %984 = vmatpush1.msra.mxu0 0.0
  %985 = vmatprep.subr.mxu0 0.0
  %986 = vmatpush1.msra.mxu0 0.0
  %987 = vmatprep.subr.mxu0 0.0
  %988 = vmatpush1.msra.mxu0 0.0
  %989 = vmatprep.subr.mxu0 0.0
  %990 = vmatpush1.msra.mxu0 0.0
  %991 = vmatprep.subr.mxu0 0.0
  %992 = vmatpush1.msra.mxu0 %v863
  %993 = vmatprep.subr.mxu0 0.0
  %994 = vmatpush1.msra.mxu0 %v862
  %995 = vmatprep.subr.mxu0 0.0
  %996 = vmatpush1.msra.mxu0 %v861
  %997 = vmatprep.subr.mxu0 0.0
  %998 = vmatpush1.msra.mxu0 %v860
  %999 = vmatprep.subr.mxu0 0.0
  %1000 = vmatpush2.msra.mxu0 0.0
  %1001 = vmatprep.subr.mxu0 0.0
  %1002 = vmatpush2.msra.mxu0 0.0
  %1003 = vmatprep.subr.mxu0 0.0
  %1004 = vmatpush2.msra.mxu0 0.0
  %1005 = vmatprep.subr.mxu0 0.0
  %1006 = vmatpush2.msra.mxu0 0.0
  %1007 = vmatprep.subr.mxu0 0.0
  %1008 = vmatpush2.msra.mxu0 0.0
  %1009 = vmatprep.subr.mxu0 0.0
  %1010 = vmatpush2.msra.mxu0 0.0
  %1011 = vmatprep.subr.mxu0 0.0
  %1012 = vmatpush2.msra.mxu0 0.0
  %1013 = vmatprep.subr.mxu0 0.0
  %1014 = vmatpush2.msra.mxu0 0.0
  %1015 = vmatprep.subr.mxu0 0.0
  %1016 = vmatpush2.msra.mxu0 0.0
  %1017 = vmatprep.subr.mxu0 0.0
  %1018 = vmatpush2.msra.mxu0 0.0
  %1019 = vmatprep.subr.mxu0 0.0
  %1020 = vmatpush2.msra.mxu0 0.0
  %1021 = vmatprep.subr.mxu0 0.0
  %1022 = vmatpush2.msra.mxu0 0.0
  %1023 = vmatprep.subr.mxu0 0.0
  %1024 = vmatpush2.msra.mxu0 0.0
  %1025 = vmatprep.subr.mxu0 0.0
  %1026 = vmatpush2.msra.mxu0 0.0
  %1027 = vmatprep.subr.mxu0 0.0
  %1028 = vmatpush2.msra.mxu0 0.0
  %1029 = vmatprep.subr.mxu0 0.0
  %1030 = vmatpush2.msra.mxu0 0.0
  %1031 = vmatprep.mubr.f32.mxu0 0.0
  %1032 = vmatmul.mubr.f32.gmra.mxu0 %v872
  %v1033 = vpop.f32.mrf.mxu0
  %v1034 = vadd.f32 %v869, %v1033
  %v1035 = vpop.f32.mrf.mxu0
  %1036 = vmatprep.mubr.f32.mxu0 0.0
  %1037 = vmatmul.mubr.f32.gmra.mxu0 %v875
  %v1038 = vpop.f32.mrf.mxu0
  %v1039 = vadd.f32 %v869, %v1038
  %v1040 = vpop.f32.mrf.mxu0
  %1041 = vmatprep.mubr.f32.mxu0 0.0
  %1042 = vmatmul.mubr.f32.gmra.mxu0 %v878
  %v1043 = vpop.f32.mrf.mxu0
  %v1044 = vadd.f32 %v869, %v1043
  %v1045 = vpop.f32.mrf.mxu0
  %1046 = vmatprep.mubr.f32.mxu0 0.0
  %1047 = vmatmul.mubr.f32.gmra.mxu0 %v881
  %v1048 = vpop.f32.mrf.mxu0
  %v1049 = vadd.f32 %v869, %v1048
  %v1050 = vpop.f32.mrf.mxu0
  %1051 = vmatprep.mubr.f32.mxu0 0.0
  %1052 = vmatmul.mubr.f32.gmra.mxu0 %v884
  %v1053 = vpop.f32.mrf.mxu0
  %v1054 = vadd.f32 %v869, %v1053
  %v1055 = vpop.f32.mrf.mxu0
  %1056 = vmatprep.mubr.f32.mxu0 0.0
  %1057 = vmatmul.mubr.f32.gmra.mxu0 %v887
  %v1058 = vpop.f32.mrf.mxu0
  %v1059 = vadd.f32 %v869, %v1058
  %v1060 = vpop.f32.mrf.mxu0
  %1061 = vmatprep.mubr.f32.mxu0 0.0
  %1062 = vmatmul.mubr.f32.gmra.mxu0 %v890
  %v1063 = vpop.f32.mrf.mxu0
  %v1064 = vadd.f32 %v869, %v1063
  %v1065 = vpop.f32.mrf.mxu0
  %1066 = vmatprep.mubr.f32.mxu0 0.0
  %1067 = vmatmul.mubr.f32.gmra.mxu0 %v893
  %v1068 = vpop.f32.mrf.mxu0
  %v1069 = vadd.f32 %v869, %v1068
  %v1070 = vpop.f32.mrf.mxu0
  %1071 = vmatprep.mubr.f32.mxu0 0.0
  %1072 = vmatmul.mubr.f32.gmra.mxu0 %v896
  %v1073 = vpop.f32.mrf.mxu0
  %v1074 = vadd.f32 %v869, %v1073
  %v1075 = vpop.f32.mrf.mxu0
  %1076 = vmatprep.mubr.f32.mxu0 0.0
  %1077 = vmatmul.mubr.f32.gmra.mxu0 %v899
  %v1078 = vpop.f32.mrf.mxu0
  %v1079 = vadd.f32 %v869, %v1078
  %v1080 = vpop.f32.mrf.mxu0
  %1081 = vmatprep.mubr.f32.mxu0 0.0
  %1082 = vmatmul.mubr.f32.gmra.mxu0 %v902
  %v1083 = vpop.f32.mrf.mxu0
  %v1084 = vadd.f32 %v869, %v1083
  %v1085 = vpop.f32.mrf.mxu0
  %1086 = vmatprep.mubr.f32.mxu0 0.0
  %1087 = vmatmul.mubr.f32.gmra.mxu0 %v905
  %v1088 = vpop.f32.mrf.mxu0
  %v1089 = vadd.f32 %v869, %v1088
  %v1090 = vpop.f32.mrf.mxu0
  %1091 = vmatprep.mubr.f32.mxu0 0.0
  %1092 = vmatmul.mubr.f32.gmra.mxu0 %v908
  %v1093 = vpop.f32.mrf.mxu0
  %v1094 = vadd.f32 %v869, %v1093
  %v1095 = vpop.f32.mrf.mxu0
  %1096 = vmatprep.mubr.f32.mxu0 0.0
  %1097 = vmatmul.mubr.f32.gmra.mxu0 %v911
  %v1098 = vpop.f32.mrf.mxu0
  %v1099 = vadd.f32 %v869, %v1098
  %v1100 = vpop.f32.mrf.mxu0
  %1101 = vmatprep.mubr.f32.mxu0 0.0
  %1102 = vmatmul.mubr.f32.gmra.mxu0 %v914
  %v1103 = vpop.f32.mrf.mxu0
  %v1104 = vadd.f32 %v869, %v1103
  %v1105 = vpop.f32.mrf.mxu0
  %1106 = vmatprep.mubr.f32.mxu0 0.0
  %1107 = vmatmul.mubr.f32.gmra.mxu0 %v917
  %v1108 = vpop.f32.mrf.mxu0
  %v1109 = vadd.f32 %v869, %v1108
  %v1110 = vpop.f32.mrf.mxu0
  %1111 = vmatprep.mubr.f32.mxu0 0.0
  %1112 = vmatmul.mubr.f32.gmra.mxu0 %v920
  %v1113 = vpop.f32.mrf.mxu0
  %v1114 = vadd.f32 %v869, %v1113
  %v1115 = vpop.f32.mrf.mxu0
  %1116 = vmatprep.mubr.f32.mxu0 0.0
  %1117 = vmatmul.mubr.f32.gmra.mxu0 %v923
  %v1118 = vpop.f32.mrf.mxu0
  %v1119 = vadd.f32 %v869, %v1118
  %v1120 = vpop.f32.mrf.mxu0
  %1121 = vmatprep.mubr.f32.mxu0 0.0
  %1122 = vmatmul.mubr.f32.gmra.mxu0 %v926
  %v1123 = vpop.f32.mrf.mxu0
  %v1124 = vadd.f32 %v869, %v1123
  %v1125 = vpop.f32.mrf.mxu0
  %1126 = vmatprep.mubr.f32.mxu0 0.0
  %1127 = vmatmul.mubr.f32.gmra.mxu0 %v929
  %v1128 = vpop.f32.mrf.mxu0
  %v1129 = vadd.f32 %v869, %v1128
  %v1130 = vpop.f32.mrf.mxu0
  %1131 = vmatprep.mubr.f32.mxu0 0.0
  %1132 = vmatmul.mubr.f32.gmra.mxu0 %v932
  %v1133 = vpop.f32.mrf.mxu0
  %v1134 = vadd.f32 %v869, %v1133
  %v1135 = vpop.f32.mrf.mxu0
  %1136 = vmatprep.mubr.f32.mxu0 0.0
  %1137 = vmatmul.mubr.f32.gmra.mxu0 %v935
  %v1138 = vpop.f32.mrf.mxu0
  %v1139 = vadd.f32 %v869, %v1138
  %v1140 = vpop.f32.mrf.mxu0
  %1141 = vmatprep.mubr.f32.mxu0 0.0
  %1142 = vmatmul.mubr.f32.gmra.mxu0 %v938
  %v1143 = vpop.f32.mrf.mxu0
  %v1144 = vadd.f32 %v869, %v1143
  %v1145 = vpop.f32.mrf.mxu0
  %1146 = vmatprep.mubr.f32.mxu0 0.0
  %1147 = vmatmul.mubr.f32.gmra.mxu0 %v941
  %v1148 = vpop.f32.mrf.mxu0
  %v1149 = vadd.f32 %v869, %v1148
  %v1150 = vpop.f32.mrf.mxu0
  %1151 = vmatprep.mubr.f32.mxu0 0.0
  %1152 = vmatmul.mubr.f32.gmra.mxu0 %v944
  %v1153 = vpop.f32.mrf.mxu0
  %v1154 = vadd.f32 %v869, %v1153
  %v1155 = vpop.f32.mrf.mxu0
  %1156 = vmatprep.mubr.f32.mxu0 0.0
  %1157 = vmatmul.mubr.f32.gmra.mxu0 %v947
  %v1158 = vpop.f32.mrf.mxu0
  %v1159 = vadd.f32 %v869, %v1158
  %v1160 = vpop.f32.mrf.mxu0
  %1161 = vmatprep.mubr.f32.mxu0 0.0
  %1162 = vmatmul.mubr.f32.gmra.mxu0 %v950
  %v1163 = vpop.f32.mrf.mxu0
  %v1164 = vadd.f32 %v869, %v1163
  %v1165 = vpop.f32.mrf.mxu0
  %1166 = vmatprep.mubr.f32.mxu0 0.0
  %1167 = vmatmul.mubr.f32.gmra.mxu0 %v953
  %v1168 = vpop.f32.mrf.mxu0
  %v1169 = vadd.f32 %v869, %v1168
  %v1170 = vpop.f32.mrf.mxu0
  %1171 = vmatprep.mubr.f32.mxu0 0.0
  %1172 = vmatmul.mubr.f32.gmra.mxu0 %v956
  %v1173 = vpop.f32.mrf.mxu0
  %v1174 = vadd.f32 %v869, %v1173
  %v1175 = vpop.f32.mrf.mxu0
  %1176 = vmatprep.mubr.f32.mxu0 0.0
  %1177 = vmatmul.mubr.f32.gmra.mxu0 %v959
  %v1178 = vpop.f32.mrf.mxu0
  %v1179 = vadd.f32 %v869, %v1178
  %v1180 = vpop.f32.mrf.mxu0
  %1181 = vmatprep.mubr.f32.mxu0 0.0
  %1182 = vmatmul.mubr.f32.gmra.mxu0 %v962
  %v1183 = vpop.f32.mrf.mxu0
  %v1184 = vadd.f32 %v869, %v1183
  %v1185 = vpop.f32.mrf.mxu0
  %1186 = vmatprep.mubr.f32.mxu0 0.0
  %1187 = vmatmul.mubr.f32.gmra.mxu0 %v965
  %v1188 = vpop.f32.mrf.mxu0
  %v1189 = vadd.f32 %v869, %v1188
  %v1190 = vpop.f32.mrf.mxu0
  %1191 = vdwg.mxu0
  %1192 = vst.msk [vmem:[%s11] sm:$0xff] %vm78, %v1034
  %1193 = vst.msk [vmem:[%s11 + $0x8] sm:$0xff] %vm78, %v1039
  %1194 = vst.msk [vmem:[%s11 + $0x10] sm:$0xff] %vm78, %v1044
  %1195 = vst.msk [vmem:[%s11 + $0x18] sm:$0xff] %vm78, %v1049
  %1196 = vst.msk [vmem:[%s11 + $0x20] sm:$0xff] %vm78, %v1054
  %1197 = vst.msk [vmem:[%s11 + $0x28] sm:$0xff] %vm78, %v1059
  %1198 = vst.msk [vmem:[%s11 + $0x30] sm:$0xff] %vm78, %v1064
  %1199 = vst.msk [vmem:[%s11 + $0x38] sm:$0xff] %vm78, %v1069
  %1200 = vst.msk [vmem:[%s11 + $0x40] sm:$0xff] %vm78, %v1074
  %1201 = vst.msk [vmem:[%s11 + $0x48] sm:$0xff] %vm78, %v1079
  %1202 = vst.msk [vmem:[%s11 + $0x50] sm:$0xff] %vm78, %v1084
  %1203 = vst.msk [vmem:[%s11 + $0x58] sm:$0xff] %vm78, %v1089
  %1204 = vst.msk [vmem:[%s11 + $0x60] sm:$0xff] %vm78, %v1094
  %1205 = vst.msk [vmem:[%s11 + $0x68] sm:$0xff] %vm78, %v1099
  %1206 = vst.msk [vmem:[%s11 + $0x70] sm:$0xff] %vm78, %v1104
  %1207 = vst.msk [vmem:[%s11 + $0x78] sm:$0xff] %vm78, %v1109
  %1208 = vst.msk [vmem:[%s11 + $0x80] sm:$0xff] %vm78, %v1114
  %1209 = vst.msk [vmem:[%s11 + $0x88] sm:$0xff] %vm78, %v1119
  %1210 = vst.msk [vmem:[%s11 + $0x90] sm:$0xff] %vm78, %v1124
  %1211 = vst.msk [vmem:[%s11 + $0x98] sm:$0xff] %vm78, %v1129
  %1212 = vst.msk [vmem:[%s11 + $0xa0] sm:$0xff] %vm78, %v1134
  %1213 = vst.msk [vmem:[%s11 + $0xa8] sm:$0xff] %vm78, %v1139
  %1214 = vst.msk [vmem:[%s11 + $0xb0] sm:$0xff] %vm78, %v1144
  %1215 = vst.msk [vmem:[%s11 + $0xb8] sm:$0xff] %vm78, %v1149
  %1216 = vst.msk [vmem:[%s11 + $0xc0] sm:$0xff] %vm78, %v1154
  %1217 = vst.msk [vmem:[%s11 + $0xc8] sm:$0xff] %vm78, %v1159
  %1218 = vst.msk [vmem:[%s11 + $0xd0] sm:$0xff] %vm78, %v1164
  %1219 = vst.msk [vmem:[%s11 + $0xd8] sm:$0xff] %vm78, %v1169
  %1220 = vst.msk [vmem:[%s11 + $0xe0] sm:$0xff] %vm78, %v1174
  %1221 = vst.msk [vmem:[%s11 + $0xe8] sm:$0xff] %vm78, %v1179
  %1222 = vst.msk [vmem:[%s11 + $0xf0] sm:$0xff] %vm78, %v1184
  %1223 = vst.msk [vmem:[%s11 + $0xf8] sm:$0xff] %vm78, %v1189
  // Predicated region
  $region38: #{tpu_custom_call.1} parent=0 // pred_check
    _
  $region39: #{tpu_custom_call.1} parent=0 // pred_check_branch
    %1225 = sbr.rel (0) target = $region41
  $region40: #{tpu_custom_call.1} parent=0 // pred_region
    _
  $region41: #{tpu_custom_call.1} parent=0 // pred_fallthru
    _
  // Predicated region
  $region42: #{tpu_custom_call.1} parent=0 // pred_check
    _
  $region43: #{tpu_custom_call.1} parent=0 // pred_check_branch
    %1227 = sbr.rel (0) target = $region45
  $region44: #{tpu_custom_call.1} parent=0 // pred_region
    _
  $region45: #{tpu_custom_call.1} parent=0 // pred_fallthru
    _
  // Predicated region
  $region46: #{tpu_custom_call.1} parent=0 // pred_check
    _
  $region47: #{tpu_custom_call.1} parent=0 // pred_check_branch
    %1229 = sbr.rel (0) target = $region49
  $region48: #{tpu_custom_call.1} parent=0 // pred_region
    _
  $region49: #{tpu_custom_call.1} parent=0 // pred_fallthru
    _
  // Predicated region
  $region50: #{tpu_custom_call.1} parent=0 // pred_check
    _
  $region51: #{tpu_custom_call.1} parent=0 // pred_check_branch
    %1231 = sbr.rel (0) target = $region53
  $region52: #{tpu_custom_call.1} parent=0 // pred_region
    _
  $region53: #{tpu_custom_call.1} parent=0 // pred_fallthru
    _
  // Predicated region
  $region54: #{tpu_custom_call.1} parent=0 // pred_check
    _
  $region55: #{tpu_custom_call.1} parent=0 // pred_check_branch
    %1233 = sbr.rel (0) target = $region57
  $region56: #{tpu_custom_call.1} parent=0 // pred_region
    _
  $region57: #{tpu_custom_call.1} parent=0 // pred_fallthru
    _
  // Predicated region
  $region58: #{tpu_custom_call.1} parent=0 // pred_check
    _
  $region59: #{tpu_custom_call.1} parent=0 // pred_check_branch
    %1235 = sbr.rel (0) target = $region61
  $region60: #{tpu_custom_call.1} parent=0 // pred_region
    _
  $region61: #{tpu_custom_call.1} parent=0 // pred_fallthru
    _

</llo_original>
